<compile_context>
chip_gen: v6e
topology: v6e:2x2x1
jax: 0.10.0
libtpu: 0.0.40
codegen_flags: <defaults>
</compile_context>

<pallas_src>
import functools

import jax
import jax.numpy as jnp
from jax.experimental import pallas as pl
from jax.experimental.pallas import tpu as pltpu


def _pe_slice_kernel(chunks, w_hbm, o_hbm, sems):
    """Copy the first seq_len rows of the PE table HBM -> HBM.

    chunks: static tuple of (row_start, row_size) covering [0, seq_len).
    All DMAs are started first (concurrent streams), then all are waited on.
    """
    copies = []
    for i, (start, size) in enumerate(chunks):
        cp = pltpu.make_async_copy(
            w_hbm.at[pl.ds(start, size), :],
            o_hbm.at[pl.ds(start, size), :],
            sems.at[i],
        )
        cp.start()
        copies.append(cp)
    for cp in copies:
        cp.wait()


def _make_chunks(seq_len: int, emb: int, itemsize: int, force_chunks=None):
    """Static row-chunking: 1 DMA for small slices, a few concurrent for big."""
    nbytes = seq_len * emb * itemsize
    if force_chunks is not None:
        num_chunks = max(1, min(force_chunks, seq_len))
    elif nbytes <= (1 << 20):          # <= 1 MiB: single DMA is plenty
        num_chunks = 1
    else:                              # large copy: use concurrent DMA streams
        num_chunks = 4
    # Round chunk size up to the f32 sublane tile (8 rows) so each DMA moves
    # whole (8, 128) tiles where possible; last chunk takes the remainder.
    base = -(-seq_len // num_chunks)
    base = max(8, -(-base // 8) * 8)
    chunks = []
    start = 0
    while start < seq_len:
        size = min(base, seq_len - start)
        chunks.append((start, size))
        start += size
    return tuple(chunks), nbytes


def learnable_positional_embedding(table: jax.Array, seq_len: int,
                                   *, force_chunks=None) -> jax.Array:
    """Return table[:seq_len, :][None] via HBM->HBM DMA(s).

    table: (max_len, E) positional-embedding table.
    result: (1, seq_len, E), same dtype — matches PyTorch weight[:, :S, :].
    """
    max_len, emb = table.shape
    assert 0 < seq_len <= max_len

    itemsize = jnp.dtype(table.dtype).itemsize
    chunks, nbytes = _make_chunks(seq_len, emb, itemsize, force_chunks)

    out = pl.pallas_call(
        functools.partial(_pe_slice_kernel, chunks),
        out_shape=jax.ShapeDtypeStruct((seq_len, emb), table.dtype),
        # Both operands stay in HBM; the kernel moves data with explicit DMAs,
        # so there is no VMEM round-trip and no grid/pipeline overhead.
        in_specs=[pl.BlockSpec(memory_space=pl.ANY)],
        out_specs=pl.BlockSpec(memory_space=pl.ANY),
        scratch_shapes=[pltpu.SemaphoreType.DMA((len(chunks),))],
        cost_estimate=pl.CostEstimate(
            flops=0, transcendentals=0, bytes_accessed=2 * nbytes),
    )(table)
    # Re-add the degenerate batch dim outside the kernel (free reshape).
    return out[None, :, :]


class LearnablePositionalEmbeddingJAX:
    """Mirror of the PyTorch module, with deterministic in-script init."""

    def __init__(self, embedding_size: int, max_len: int = 512,
                 *, key: jax.Array):
        # pe = 0.1 * randn(max_len, embedding_size); pe = pe.unsqueeze(0)
        self.table = 0.1 * jax.random.normal(
            key, (max_len, embedding_size), dtype=jnp.float32)   # (max_len, E)
        self.weight = self.table[None, :, :]                     # (1, max_len, E)

    def __call__(self, x: jax.Array) -> jax.Array:
        seq_len = x.shape[1]  # Dim.seq
        return learnable_positional_embedding(self.table, seq_len)


if __name__ == "__main__":
    key = jax.random.PRNGKey(0)
    k_w, k_x = jax.random.split(key)

    embedding_size = 128
    max_len = 512
    batch, seq, feature = 2, 8, 128

    module = LearnablePositionalEmbeddingJAX(embedding_size, max_len, key=k_w)
    x = jax.random.normal(k_x, (batch, seq, feature), dtype=jnp.float32)

    # Standard (single-DMA) path.
    out = jax.block_until_ready(module(x))
    ref = module.weight[:, :seq, :]
    assert out.shape == (1, seq, embedding_size), out.shape
    assert out.dtype == jnp.float32
    assert bool(jnp.array_equal(out, ref))

    # Also exercise the chunked (multi-DMA) path for correctness on a longer
    # slice, forcing >1 concurrent DMA even though it's below the 1 MiB cutoff.
    seq_long = 384
    out_long = jax.block_until_ready(
        learnable_positional_embedding(module.table, seq_long, force_chunks=4))
    ref_long = module.weight[:, :seq_long, :]
    assert out_long.shape == (1, seq_long, embedding_size)
    assert bool(jnp.array_equal(out_long, ref_long))

    print("KERNEL_OK")
</pallas_src>

<mosaic_0001>
module attributes {stable_mosaic.version = 11 : i64} {
  func.func @_pe_slice_kernel(%arg0: memref<512x128xf32, #tpu.memory_space<any>>, %arg1: memref<8x128xf32, #tpu.memory_space<any>>, %arg2: memref<1x!tpu.dma_semaphore, #tpu.memory_space<semaphore_mem>>) attributes {dimension_semantics = [], scalar_prefetch = 0 : i64, scratch_operands = 1 : i64, tpu.core_type = #tpu.core_type<tc>} {
    %c0_i32 = arith.constant 0 : i32
    %c0_i32_0 = arith.constant 0 : i32
    %c0_i32_1 = arith.constant 0 : i32
    %0 = tpu.memref_slice %arg0[%c0_i32_0, %c0_i32_1] : memref<512x128xf32, #tpu.memory_space<any>> -> memref<8x128xf32, #tpu.memory_space<any>>
    %c0_i32_2 = arith.constant 0 : i32
    %c0_i32_3 = arith.constant 0 : i32
    %1 = tpu.memref_slice %arg1[%c0_i32_2, %c0_i32_3] : memref<8x128xf32, #tpu.memory_space<any>> -> memref<8x128xf32, #tpu.memory_space<any>>
    %2 = tpu.memref_slice %arg2[%c0_i32] : memref<1x!tpu.dma_semaphore, #tpu.memory_space<semaphore_mem>> -> memref<1x!tpu.dma_semaphore, #tpu.memory_space<semaphore_mem>>
    %3 = tpu.memref_squeeze %2 : memref<1x!tpu.dma_semaphore, #tpu.memory_space<semaphore_mem>> -> memref<!tpu.dma_semaphore, #tpu.memory_space<semaphore_mem>>
    tpu.enqueue_dma source(%0 : memref<8x128xf32, #tpu.memory_space<any>>) target(%1 : memref<8x128xf32, #tpu.memory_space<any>>) target_semaphore(%3 : memref<!tpu.dma_semaphore, #tpu.memory_space<semaphore_mem>>)
    %c0_i32_4 = arith.constant 0 : i32
    %c0_i32_5 = arith.constant 0 : i32
    %c0_i32_6 = arith.constant 0 : i32
    %4 = tpu.memref_slice %arg0[%c0_i32_5, %c0_i32_6] : memref<512x128xf32, #tpu.memory_space<any>> -> memref<8x128xf32, #tpu.memory_space<any>>
    %c0_i32_7 = arith.constant 0 : i32
    %c0_i32_8 = arith.constant 0 : i32
    %5 = tpu.memref_slice %arg1[%c0_i32_7, %c0_i32_8] : memref<8x128xf32, #tpu.memory_space<any>> -> memref<8x128xf32, #tpu.memory_space<any>>
    %6 = tpu.memref_slice %arg2[%c0_i32_4] : memref<1x!tpu.dma_semaphore, #tpu.memory_space<semaphore_mem>> -> memref<1x!tpu.dma_semaphore, #tpu.memory_space<semaphore_mem>>
    %7 = tpu.memref_squeeze %6 : memref<1x!tpu.dma_semaphore, #tpu.memory_space<semaphore_mem>> -> memref<!tpu.dma_semaphore, #tpu.memory_space<semaphore_mem>>
    tpu.wait_dma2 semaphore(%7 : memref<!tpu.dma_semaphore, #tpu.memory_space<semaphore_mem>>) src(%4 : memref<8x128xf32, #tpu.memory_space<any>>) dst(%5 : memref<8x128xf32, #tpu.memory_space<any>>)
    return
  }
}

</mosaic_0001>

<llo_original>
// kernel: tpu_custom_call.1
$region0: #{tpu_custom_call.1}
  #allocation0 [shape = 'u32[]', space=smem, size = 0x4, offset = 0x4, fixed_abs, tag = 'smem constant byte address 0x4 - core index']
  #allocation1 [shape = 'u32[144,128]{1,0:T(1,128)}', space=vmem, size = 0x12000, scoped, tag = 'internal scratch']
  #allocation2 [shape = 's32[1]{0}', space=sflag, size = 0x4, scoped, tag = 'scratch operand']
  #allocation3 [shape = 's32[]', space=sflag, size = 0x4, offset = 0, fixed_abs, tag = 'sflag constant byte address 0x0 - dummy sync flag']
  #allocation4 [shape = 'u32[0]{0}', space=smem, size = 0, offset = 0, fixed_abs, tag = 'smem constant byte address 0x0 - null']
  %s0 = inlined_call_operand.hbm [shape: f32[512,128], index: 0, kind: input, shape index: {}]
  %s1 = inlined_call_operand.hbm [shape: f32[8,128], index: 1, kind: output, shape index: {}]
  %s2 = sld [smem:[#allocation0]]
  $region2: #{tpu_custom_call.1} parent=0
    _
  %s4 = ssub.s32 1, %s2
  %s5 = scalar_select 0, %s4, %s2
  %s7 = sshll.u32 1, 14
  %s8 = sxor.u32 4294967295, %s7
  %12 = dma.general %s0, 128, %s1, [#allocation2], 131072, [#allocation4], 0, 0
  %s13 = smul.u32 8, 1
  %s14 = sshll.u32 %s13, 4
  %15 = dma.done [#allocation2], %s14
  %16 = vsyncmov [#allocation2]
  %s17 = vpop.sfrf %16
  %p18 = scmp.eq.s32.totalorder %s17, 0
  %p19 = pneg %p18
  %21 = shalt.err (%p19)

</llo_original>
